<compile_context>
chip_gen: v6e
topology: v6e:2x2x1
jax: 0.10.0
libtpu: 0.0.40
codegen_flags: <defaults>
</compile_context>

<pallas_src>
import functools

import jax
import jax.numpy as jnp
from jax import lax
from jax.experimental import pallas as pl
from jax.experimental.pallas import tpu as pltpu

LN_EPS = 1e-5   # torch.nn.LayerNorm default
LANE = 128
SUBLANE = 8


def _round_up(v, m):
    return ((v + m - 1) // m) * m


# ---------------------------------------------------------------------------
# Kernel
# ---------------------------------------------------------------------------
def _masked_layer_norm(h, gamma, beta, mask, inv_count):
    """LayerNorm over the last axis where only `mask` lanes are valid.

    `h` is (tm, h_pad) f32 and its padded lanes are guaranteed to be exactly
    zero by construction (zero-padded weights / biases), so a plain sum is the
    correct sum over valid lanes; the centered values are re-masked before the
    variance reduction.
    """
    mu = jnp.sum(h, axis=-1, keepdims=True) * inv_count
    centered = jnp.where(mask, h - mu, 0.0)
    var = jnp.sum(centered * centered, axis=-1, keepdims=True) * inv_count
    return centered * lax.rsqrt(var + LN_EPS) * gamma + beta


def timeframe_encoder_kernel(
    x_ref,      # (TM, Din_pad)   storage dtype (f32 or bf16)
    w1_ref,     # (Din_pad, H_pad)
    b1_ref,     # (1, H_pad)
    g1_ref,     # (1, H_pad)
    be1_ref,    # (1, H_pad)
    w2_ref,     # (H_pad, H_pad)
    b2_ref,     # (1, H_pad)
    g2_ref,     # (1, H_pad)
    be2_ref,    # (1, H_pad)
    o_ref,      # (TM, H_pad)
    *,
    hidden_dim: int,
):
    h_pad = o_ref.shape[-1]
    mask = lax.broadcasted_iota(jnp.int32, (1, h_pad), 1) < hidden_dim
    inv_h = jnp.float32(1.0 / hidden_dim)

    x = x_ref[...]  # keep storage dtype; bf16 operands hit the bf16 MXU path

    # ---- Linear 1 (MXU, f32 accumulation) + masked LayerNorm + ReLU ----
    h = jnp.dot(x, w1_ref[...], preferred_element_type=jnp.float32)
    h = h + b1_ref[...].astype(jnp.float32)
    h = _masked_layer_norm(
        h, g1_ref[...].astype(jnp.float32), be1_ref[...].astype(jnp.float32),
        mask, inv_h)
    h = jnp.maximum(h, 0.0)

    # Dropout(0.1): identity in eval mode.
    # TODO(synk): training-mode stochastic dropout intentionally not implemented.

    # ---- Linear 2 (MXU, f32 accumulation) + masked LayerNorm + ReLU ----
    h = jnp.dot(h.astype(w2_ref.dtype), w2_ref[...],
                preferred_element_type=jnp.float32)
    h = h + b2_ref[...].astype(jnp.float32)
    h = _masked_layer_norm(
        h, g2_ref[...].astype(jnp.float32), be2_ref[...].astype(jnp.float32),
        mask, inv_h)
    h = jnp.maximum(h, 0.0)

    o_ref[...] = h.astype(o_ref.dtype)


# ---------------------------------------------------------------------------
# Wrapper
# ---------------------------------------------------------------------------
def timeframe_encoder(x, params, *, tm=512):
    """x: (..., input_dim) -> (..., hidden_dim). Fused Pallas forward pass.

    tm: row tile (rows of flattened batch*seq). Sweep 256-2048 at production
        shapes; it is clamped to the (8-aligned) row count for tiny inputs.
    """
    orig_shape = x.shape
    din = orig_shape[-1]
    hidden = params["w1"].shape[1]
    x2d = x.reshape(-1, din)
    n = x2d.shape[0]

    # Lane-dense padded feature dims (multiples of 128).
    din_pad = _round_up(din, LANE)
    h_pad = _round_up(hidden, LANE)

    # Row tile: multiple of the 8-row sublane, no larger than the padded row count.
    tm = max(SUBLANE, _round_up(min(tm, _round_up(n, SUBLANE)), SUBLANE))
    n_pad = _round_up(n, tm)

    pdt = params["w1"].dtype

    # Zero-pad everything. Padded x columns / w rows / w cols / biases are zero,
    # so padded lanes of every intermediate stay exactly zero; the kernel's
    # LayerNorm masks them and divides by the true hidden_dim.
    xp = jnp.zeros((n_pad, din_pad), x.dtype).at[:n, :din].set(x2d)
    w1 = jnp.zeros((din_pad, h_pad), pdt).at[:din, :hidden].set(params["w1"])
    w2 = jnp.zeros((h_pad, h_pad), pdt).at[:hidden, :hidden].set(params["w2"])

    def padv(v):
        return jnp.zeros((1, h_pad), v.dtype).at[:, :hidden].set(v)

    b1, g1, be1 = padv(params["b1"]), padv(params["g1"]), padv(params["be1"])
    b2, g2, be2 = padv(params["b2"]), padv(params["g2"]), padv(params["be2"])

    grid = (n_pad // tm,)

    # VMEM budget: double-buffered x & out tiles + single-buffered weights.
    act_bytes = jnp.dtype(x.dtype).itemsize
    par_bytes = jnp.dtype(pdt).itemsize
    w_total = (din_pad * h_pad + h_pad * h_pad + 6 * h_pad) * par_bytes
    vmem_est = 2 * tm * din_pad * act_bytes + 2 * tm * h_pad * act_bytes + w_total
    # Cap at 64 MiB so the same configuration is valid on v7x (64 MiB physical).
    vmem_limit = int(min(max(vmem_est + (8 << 20), 32 << 20), 64 << 20))

    cost = pl.CostEstimate(
        flops=2 * n_pad * (din_pad * h_pad + h_pad * h_pad) + 12 * n_pad * h_pad,
        transcendentals=2 * n_pad,
        bytes_accessed=(n_pad * din_pad + n_pad * h_pad) * act_bytes + w_total,
    )

    # Weights / params never change across the grid -> single-buffer them.
    def rep(shape):
        return pl.BlockSpec(shape, lambda i: (0, 0),
                            pipeline_mode=pl.Buffered(1))

    out = pl.pallas_call(
        functools.partial(timeframe_encoder_kernel, hidden_dim=hidden),
        out_shape=jax.ShapeDtypeStruct((n_pad, h_pad), x.dtype),
        grid_spec=pltpu.PrefetchScalarGridSpec(
            num_scalar_prefetch=0,
            grid=grid,
            in_specs=[
                pl.BlockSpec((tm, din_pad), lambda i: (i, 0)),   # x row tile
                rep((din_pad, h_pad)),                           # w1
                rep((1, h_pad)),                                 # b1
                rep((1, h_pad)),                                 # ln1 gamma
                rep((1, h_pad)),                                 # ln1 beta
                rep((h_pad, h_pad)),                             # w2
                rep((1, h_pad)),                                 # b2
                rep((1, h_pad)),                                 # ln2 gamma
                rep((1, h_pad)),                                 # ln2 beta
            ],
            out_specs=pl.BlockSpec((tm, h_pad), lambda i: (i, 0)),
        ),
        compiler_params=pltpu.CompilerParams(
            dimension_semantics=("parallel",),
            vmem_limit_bytes=vmem_limit,
        ),
        cost_estimate=cost,
    )(xp, w1, b1, g1, be1, w2, b2, g2, be2)

    out = out[:n, :hidden]
    return out.reshape(*orig_shape[:-1], hidden)


# ---------------------------------------------------------------------------
# Params / reference
# ---------------------------------------------------------------------------
def init_params(key, input_dim, hidden_dim, dtype=jnp.float32):
    """Deterministic synthetic init mirroring the PyTorch module's shapes.

    nn.Linear stores weight as (out, in); we keep the transposed (in, out)
    layout so the kernel can do x @ W directly.
    """
    k1, k2, k3, k4 = jax.random.split(key, 4)
    lim1 = 1.0 / jnp.sqrt(input_dim)
    lim2 = 1.0 / jnp.sqrt(hidden_dim)
    return {
        "w1": jax.random.uniform(k1, (input_dim, hidden_dim), dtype, -lim1, lim1),
        "b1": jax.random.uniform(k2, (1, hidden_dim), dtype, -lim1, lim1),
        "g1": jnp.ones((1, hidden_dim), dtype),
        "be1": jnp.zeros((1, hidden_dim), dtype),
        "w2": jax.random.uniform(k3, (hidden_dim, hidden_dim), dtype, -lim2, lim2),
        "b2": jax.random.uniform(k4, (1, hidden_dim), dtype, -lim2, lim2),
        "g2": jnp.ones((1, hidden_dim), dtype),
        "be2": jnp.zeros((1, hidden_dim), dtype),
    }


def _layer_norm_ref(h, gamma, beta):
    mu = jnp.mean(h, axis=-1, keepdims=True)
    var = jnp.mean((h - mu) * (h - mu), axis=-1, keepdims=True)
    return (h - mu) * lax.rsqrt(var + LN_EPS) * gamma + beta


def reference_forward(x, params):
    """Pure-JAX reference of the PyTorch forward (eval mode), f32."""
    h = x @ params["w1"] + params["b1"]
    h = _layer_norm_ref(h, params["g1"], params["be1"])
    h = jnp.maximum(h, 0.0)
    h = h @ params["w2"] + params["b2"]
    h = _layer_norm_ref(h, params["g2"], params["be2"])
    return jnp.maximum(h, 0.0)


# ---------------------------------------------------------------------------
# Self-test
# ---------------------------------------------------------------------------
if __name__ == "__main__":
    key = jax.random.PRNGKey(0)
    kx, kp = jax.random.split(key)

    batch, seq, input_dim, hidden_dim = 2, 8, 16, 32
    x = jax.random.normal(kx, (batch, seq, input_dim), jnp.float32)
    params = init_params(kp, input_dim, hidden_dim, jnp.float32)

    ref = reference_forward(x.reshape(-1, input_dim), params).reshape(
        batch, seq, hidden_dim
    )

    # f32 storage path: must match the reference tightly.
    out = jax.block_until_ready(timeframe_encoder(x, params))
    assert out.shape == (batch, seq, hidden_dim), out.shape
    assert jnp.allclose(out, ref, atol=1e-5, rtol=1e-5), "f32 mismatch vs reference"

    # bf16 storage path (halved DMA traffic, bf16 MXU, f32 accumulation/LN).
    x_bf = x.astype(jnp.bfloat16)
    params_bf = {k: v.astype(jnp.bfloat16) for k, v in params.items()}
    out_bf = jax.block_until_ready(timeframe_encoder(x_bf, params_bf))
    assert out_bf.shape == (batch, seq, hidden_dim), out_bf.shape
    assert jnp.allclose(out_bf.astype(jnp.float32), ref, atol=2e-1, rtol=2e-1), (
        "bf16 mismatch vs reference"
    )

    print("KERNEL_OK")
</pallas_src>

<mosaic_0001>
module attributes {stable_mosaic.version = 11 : i64} {
  func.func @timeframe_encoder_kernel(%arg0: i32, %arg1: memref<16x128xf32, #tpu.memory_space<vmem>>, %arg2: memref<128x128xf32, #tpu.memory_space<vmem>>, %arg3: memref<1x128xf32, #tpu.memory_space<vmem>>, %arg4: memref<1x128xf32, #tpu.memory_space<vmem>>, %arg5: memref<1x128xf32, #tpu.memory_space<vmem>>, %arg6: memref<128x128xf32, #tpu.memory_space<vmem>>, %arg7: memref<1x128xf32, #tpu.memory_space<vmem>>, %arg8: memref<1x128xf32, #tpu.memory_space<vmem>>, %arg9: memref<1x128xf32, #tpu.memory_space<vmem>>, %arg10: memref<16x128xf32, #tpu.memory_space<vmem>>) attributes {dimension_semantics = [#tpu.dimension_semantics<parallel>], iteration_bounds = array<i64: 1>, scalar_prefetch = 0 : i64, scratch_operands = 0 : i64, tpu.core_type = #tpu.core_type<tc>, window_params = [{transform_indices = @transform_0, window_bounds = array<i64: 16, 128>}, {pipeline_mode = #tpu.pipeline_mode<synchronous>, transform_indices = @transform_1, window_bounds = array<i64: 128, 128>}, {pipeline_mode = #tpu.pipeline_mode<synchronous>, transform_indices = @transform_2, window_bounds = array<i64: 1, 128>}, {pipeline_mode = #tpu.pipeline_mode<synchronous>, transform_indices = @transform_3, window_bounds = array<i64: 1, 128>}, {pipeline_mode = #tpu.pipeline_mode<synchronous>, transform_indices = @transform_4, window_bounds = array<i64: 1, 128>}, {pipeline_mode = #tpu.pipeline_mode<synchronous>, transform_indices = @transform_5, window_bounds = array<i64: 128, 128>}, {pipeline_mode = #tpu.pipeline_mode<synchronous>, transform_indices = @transform_6, window_bounds = array<i64: 1, 128>}, {pipeline_mode = #tpu.pipeline_mode<synchronous>, transform_indices = @transform_7, window_bounds = array<i64: 1, 128>}, {pipeline_mode = #tpu.pipeline_mode<synchronous>, transform_indices = @transform_8, window_bounds = array<i64: 1, 128>}, {transform_indices = @transform_9, window_bounds = array<i64: 16, 128>}]} {
    %0 = tpu.iota {dimensions = array<i32: 1>} : vector<1x128xi32>
    %c32_i32 = arith.constant 32 : i32
    %1 = vector.broadcast %c32_i32 : i32 to vector<1x128xi32>
    %2 = arith.cmpi slt, %0, %1 : vector<1x128xi32>
    %c0 = arith.constant 0 : index
    %c0_0 = arith.constant 0 : index
    %3 = vector.load %arg1[%c0, %c0_0] : memref<16x128xf32, #tpu.memory_space<vmem>>, vector<16x128xf32>
    %c0_1 = arith.constant 0 : index
    %c0_2 = arith.constant 0 : index
    %4 = vector.load %arg2[%c0_1, %c0_2] : memref<128x128xf32, #tpu.memory_space<vmem>>, vector<128x128xf32>
    %cst = arith.constant dense<0.000000e+00> : vector<16x128xf32>
    %5 = tpu.matmul %3, %4, %cst {dimension_numbers = #tpu.dot_dimension_numbers<[1], [0], [0], [1], [0, 0, 1, 1], [], []>} : vector<16x128xf32>, vector<128x128xf32>, vector<16x128xf32> -> vector<16x128xf32>
    %c0_3 = arith.constant 0 : index
    %c0_4 = arith.constant 0 : index
    %6 = vector.load %arg3[%c0_3, %c0_4] : memref<1x128xf32, #tpu.memory_space<vmem>>, vector<1x128xf32>
    %7 = vector.broadcast %6 : vector<1x128xf32> to vector<16x128xf32>
    %8 = arith.addf %5, %7 : vector<16x128xf32>
    %c0_5 = arith.constant 0 : index
    %c0_6 = arith.constant 0 : index
    %9 = vector.load %arg4[%c0_5, %c0_6] : memref<1x128xf32, #tpu.memory_space<vmem>>, vector<1x128xf32>
    %c0_7 = arith.constant 0 : index
    %c0_8 = arith.constant 0 : index
    %10 = vector.load %arg5[%c0_7, %c0_8] : memref<1x128xf32, #tpu.memory_space<vmem>>, vector<1x128xf32>
    %cst_9 = arith.constant dense<0.000000e+00> : vector<16xf32>
    %11 = vector.multi_reduction <add>, %8, %cst_9 [1] : vector<16x128xf32> to vector<16xf32>
    %12 = vector.shape_cast %11 : vector<16xf32> to vector<16x1xf32>
    %cst_10 = arith.constant 3.125000e-02 : f32
    %13 = vector.broadcast %cst_10 : f32 to vector<16x1xf32>
    %14 = arith.mulf %12, %13 : vector<16x1xf32>
    %15 = vector.broadcast %14 : vector<16x1xf32> to vector<16x128xf32>
    %16 = arith.subf %8, %15 : vector<16x128xf32>
    %cst_11 = arith.constant 0.000000e+00 : f32
    %17 = vector.shape_cast %2 : vector<1x128xi1> to vector<1x128xi1>
    %18 = vector.broadcast %17 : vector<1x128xi1> to vector<16x128xi1>
    %19 = vector.broadcast %cst_11 : f32 to vector<16x128xf32>
    %20 = arith.select %18, %16, %19 : vector<16x128xi1>, vector<16x128xf32>
    %21 = arith.mulf %20, %20 : vector<16x128xf32>
    %cst_12 = arith.constant dense<0.000000e+00> : vector<16xf32>
    %22 = vector.multi_reduction <add>, %21, %cst_12 [1] : vector<16x128xf32> to vector<16xf32>
    %23 = vector.shape_cast %22 : vector<16xf32> to vector<16x1xf32>
    %cst_13 = arith.constant 3.125000e-02 : f32
    %24 = vector.broadcast %cst_13 : f32 to vector<16x1xf32>
    %25 = arith.mulf %23, %24 : vector<16x1xf32>
    %cst_14 = arith.constant 9.99999974E-6 : f32
    %26 = vector.broadcast %cst_14 : f32 to vector<16x1xf32>
    %27 = arith.addf %25, %26 : vector<16x1xf32>
    %28 = math.rsqrt %27 : vector<16x1xf32>
    %29 = vector.broadcast %28 : vector<16x1xf32> to vector<16x128xf32>
    %30 = arith.mulf %20, %29 : vector<16x128xf32>
    %31 = vector.broadcast %9 : vector<1x128xf32> to vector<16x128xf32>
    %32 = arith.mulf %30, %31 : vector<16x128xf32>
    %33 = vector.broadcast %10 : vector<1x128xf32> to vector<16x128xf32>
    %34 = arith.addf %32, %33 : vector<16x128xf32>
    %cst_15 = arith.constant 0.000000e+00 : f32
    %35 = vector.broadcast %cst_15 : f32 to vector<16x128xf32>
    %36 = arith.maximumf %34, %35 : vector<16x128xf32>
    %c0_16 = arith.constant 0 : index
    %c0_17 = arith.constant 0 : index
    %37 = vector.load %arg6[%c0_16, %c0_17] : memref<128x128xf32, #tpu.memory_space<vmem>>, vector<128x128xf32>
    %cst_18 = arith.constant dense<0.000000e+00> : vector<16x128xf32>
    %38 = tpu.matmul %36, %37, %cst_18 {dimension_numbers = #tpu.dot_dimension_numbers<[1], [0], [0], [1], [0, 0, 1, 1], [], []>} : vector<16x128xf32>, vector<128x128xf32>, vector<16x128xf32> -> vector<16x128xf32>
    %c0_19 = arith.constant 0 : index
    %c0_20 = arith.constant 0 : index
    %39 = vector.load %arg7[%c0_19, %c0_20] : memref<1x128xf32, #tpu.memory_space<vmem>>, vector<1x128xf32>
    %40 = vector.broadcast %39 : vector<1x128xf32> to vector<16x128xf32>
    %41 = arith.addf %38, %40 : vector<16x128xf32>
    %c0_21 = arith.constant 0 : index
    %c0_22 = arith.constant 0 : index
    %42 = vector.load %arg8[%c0_21, %c0_22] : memref<1x128xf32, #tpu.memory_space<vmem>>, vector<1x128xf32>
    %c0_23 = arith.constant 0 : index
    %c0_24 = arith.constant 0 : index
    %43 = vector.load %arg9[%c0_23, %c0_24] : memref<1x128xf32, #tpu.memory_space<vmem>>, vector<1x128xf32>
    %cst_25 = arith.constant dense<0.000000e+00> : vector<16xf32>
    %44 = vector.multi_reduction <add>, %41, %cst_25 [1] : vector<16x128xf32> to vector<16xf32>
    %45 = vector.shape_cast %44 : vector<16xf32> to vector<16x1xf32>
    %cst_26 = arith.constant 3.125000e-02 : f32
    %46 = vector.broadcast %cst_26 : f32 to vector<16x1xf32>
    %47 = arith.mulf %45, %46 : vector<16x1xf32>
    %48 = vector.broadcast %47 : vector<16x1xf32> to vector<16x128xf32>
    %49 = arith.subf %41, %48 : vector<16x128xf32>
    %cst_27 = arith.constant 0.000000e+00 : f32
    %50 = vector.shape_cast %2 : vector<1x128xi1> to vector<1x128xi1>
    %51 = vector.broadcast %50 : vector<1x128xi1> to vector<16x128xi1>
    %52 = vector.broadcast %cst_27 : f32 to vector<16x128xf32>
    %53 = arith.select %51, %49, %52 : vector<16x128xi1>, vector<16x128xf32>
    %54 = arith.mulf %53, %53 : vector<16x128xf32>
    %cst_28 = arith.constant dense<0.000000e+00> : vector<16xf32>
    %55 = vector.multi_reduction <add>, %54, %cst_28 [1] : vector<16x128xf32> to vector<16xf32>
    %56 = vector.shape_cast %55 : vector<16xf32> to vector<16x1xf32>
    %cst_29 = arith.constant 3.125000e-02 : f32
    %57 = vector.broadcast %cst_29 : f32 to vector<16x1xf32>
    %58 = arith.mulf %56, %57 : vector<16x1xf32>
    %cst_30 = arith.constant 9.99999974E-6 : f32
    %59 = vector.broadcast %cst_30 : f32 to vector<16x1xf32>
    %60 = arith.addf %58, %59 : vector<16x1xf32>
    %61 = math.rsqrt %60 : vector<16x1xf32>
    %62 = vector.broadcast %61 : vector<16x1xf32> to vector<16x128xf32>
    %63 = arith.mulf %53, %62 : vector<16x128xf32>
    %64 = vector.broadcast %42 : vector<1x128xf32> to vector<16x128xf32>
    %65 = arith.mulf %63, %64 : vector<16x128xf32>
    %66 = vector.broadcast %43 : vector<1x128xf32> to vector<16x128xf32>
    %67 = arith.addf %65, %66 : vector<16x128xf32>
    %cst_31 = arith.constant 0.000000e+00 : f32
    %68 = vector.broadcast %cst_31 : f32 to vector<16x128xf32>
    %69 = arith.maximumf %67, %68 : vector<16x128xf32>
    %c0_32 = arith.constant 0 : index
    %c0_33 = arith.constant 0 : index
    %70 = vector.load %arg10[%c0_32, %c0_33] : memref<16x128xf32, #tpu.memory_space<vmem>>, vector<16x128xf32>
    tpu.vector_store %arg10[%c0_32, %c0_33], %69 {strides = array<i32>} : memref<16x128xf32, #tpu.memory_space<vmem>>, vector<16x128xf32>,
    return
  }
  func.func @transform_0(%arg0: i32) -> (i32, i32) {
    %c0_i32 = arith.constant 0 : i32
    %c0_i32_0 = arith.constant 0 : i32
    return %arg0, %c0_i32 : i32, i32
  }
  func.func @transform_1(%arg0: i32) -> (i32, i32) {
    %c0_i32 = arith.constant 0 : i32
    %c0_i32_0 = arith.constant 0 : i32
    %c0_i32_1 = arith.constant 0 : i32
    return %c0_i32, %c0_i32_0 : i32, i32
  }
  func.func @transform_2(%arg0: i32) -> (i32, i32) {
    %c0_i32 = arith.constant 0 : i32
    %c0_i32_0 = arith.constant 0 : i32
    %c0_i32_1 = arith.constant 0 : i32
    return %c0_i32, %c0_i32_0 : i32, i32
  }
  func.func @transform_3(%arg0: i32) -> (i32, i32) {
    %c0_i32 = arith.constant 0 : i32
    %c0_i32_0 = arith.constant 0 : i32
    %c0_i32_1 = arith.constant 0 : i32
    return %c0_i32, %c0_i32_0 : i32, i32
  }
  func.func @transform_4(%arg0: i32) -> (i32, i32) {
    %c0_i32 = arith.constant 0 : i32
    %c0_i32_0 = arith.constant 0 : i32
    %c0_i32_1 = arith.constant 0 : i32
    return %c0_i32, %c0_i32_0 : i32, i32
  }
  func.func @transform_5(%arg0: i32) -> (i32, i32) {
    %c0_i32 = arith.constant 0 : i32
    %c0_i32_0 = arith.constant 0 : i32
    %c0_i32_1 = arith.constant 0 : i32
    return %c0_i32, %c0_i32_0 : i32, i32
  }
  func.func @transform_6(%arg0: i32) -> (i32, i32) {
    %c0_i32 = arith.constant 0 : i32
    %c0_i32_0 = arith.constant 0 : i32
    %c0_i32_1 = arith.constant 0 : i32
    return %c0_i32, %c0_i32_0 : i32, i32
  }
  func.func @transform_7(%arg0: i32) -> (i32, i32) {
    %c0_i32 = arith.constant 0 : i32
    %c0_i32_0 = arith.constant 0 : i32
    %c0_i32_1 = arith.constant 0 : i32
    return %c0_i32, %c0_i32_0 : i32, i32
  }
  func.func @transform_8(%arg0: i32) -> (i32, i32) {
    %c0_i32 = arith.constant 0 : i32
    %c0_i32_0 = arith.constant 0 : i32
    %c0_i32_1 = arith.constant 0 : i32
    return %c0_i32, %c0_i32_0 : i32, i32
  }
  func.func @transform_9(%arg0: i32) -> (i32, i32) {
    %c0_i32 = arith.constant 0 : i32
    %c0_i32_0 = arith.constant 0 : i32
    return %arg0, %c0_i32 : i32, i32
  }
}

</mosaic_0001>

<llo_original>
// kernel: tpu_custom_call.1
$region0: #{tpu_custom_call.1}
  #allocation0 [shape = 'u32[]', space=smem, size = 0x4, offset = 0x4, fixed_abs, tag = 'smem constant byte address 0x4 - core index']
  #allocation1 [shape = 'u32[144,128]{1,0:T(1,128)}', space=vmem, size = 0x12000, scoped, tag = 'internal scratch']
  %s0 = inlined_call_operand.hbm [shape: f32[16,128], index: 0, kind: input, shape index: {}]
  %s1 = inlined_call_operand.hbm [shape: f32[128,128], index: 1, kind: input, shape index: {}]
  %s2 = inlined_call_operand.vmem [shape: f32[1,128], index: 2, kind: input, shape index: {}]
  %s3 = inlined_call_operand.vmem [shape: f32[1,128], index: 3, kind: input, shape index: {}]
  %s4 = inlined_call_operand.vmem [shape: f32[1,128], index: 4, kind: input, shape index: {}]
  %s5 = inlined_call_operand.hbm [shape: f32[128,128], index: 5, kind: input, shape index: {}]
  %s6 = inlined_call_operand.vmem [shape: f32[1,128], index: 6, kind: input, shape index: {}]
  %s7 = inlined_call_operand.vmem [shape: f32[1,128], index: 7, kind: input, shape index: {}]
  %s8 = inlined_call_operand.vmem [shape: f32[1,128], index: 8, kind: input, shape index: {}]
  %s9 = inlined_call_operand.hbm [shape: f32[16,128], index: 9, kind: output, shape index: {}]
  %s10 = sld [smem:[#allocation0]]
  $region58: #{tpu_custom_call.1} parent=0
    _
  %s12 = ssub.s32 1, %s10
  %s13 = scalar_select 0, %s12, %s10
  $region1: #{tpu_custom_call.1} parent=0
    #allocation2 [shape = 'u8[8192]{0}', space=vmem, size = 0x2000, scoped, tag = 'input window, operand 0, single buffered']
    #allocation3 [shape = 's32[1]{0}', space=sflag, size = 0x4, scoped, tag = 'scoped memory for tpu_custom_call.1']
    #allocation4 [shape = 's32[1]{0}', space=sflag, size = 0x4, scoped, tag = 'scoped memory for tpu_custom_call.1']
    #allocation5 [shape = 'u8[65536]{0}', space=vmem, size = 0x10000, scoped, tag = 'input window, operand 1, single buffered']
    #allocation6 [shape = 's32[1]{0}', space=sflag, size = 0x4, scoped, tag = 'scoped memory for tpu_custom_call.1']
    #allocation7 [shape = 'u8[65536]{0}', space=vmem, size = 0x10000, scoped, tag = 'input window, operand 5, single buffered']
    #allocation8 [shape = 'u8[8192]{0}', space=vmem, size = 0x2000, scoped, tag = 'output window, operand 0, single buffered']
    %14 = vsyncpa [#allocation3], 0
    %15 = vsyncpa [#allocation6], 0
    %16 = vsyncpa [#allocation4], 0
    // Predicated region
    $region2: #{tpu_custom_call.1} parent=1 // pred_check
      _
    $region3: #{tpu_custom_call.1} parent=1 // pred_check_branch
      %18 = sbr.rel (0) target = $region5
    $region4: #{tpu_custom_call.1} parent=1 // pred_region
      %s20 = ssub.s32 256, 256
      %21 = vsyncadd [#allocation3], %s20
      %s22 = sshll.u32 [#allocation2], 4
      %s23 = int_to_ptr.vmem [resolvable:$true] %s22
      %28 = dma.hbm_to_vmem [thread:$0]  %s0, 256, %s23, [#allocation3], 128, 128, 8
    $region5: #{tpu_custom_call.1} parent=1 // pred_fallthru
      _
    // Predicated region
    $region6: #{tpu_custom_call.1} parent=1 // pred_check
      _
    $region7: #{tpu_custom_call.1} parent=1 // pred_check_branch
      %30 = sbr.rel (0) target = $region9
    $region8: #{tpu_custom_call.1} parent=1 // pred_region
      %s32 = ssub.s32 2048, 2048
      %33 = vsyncadd [#allocation6], %s32
      %s34 = sshll.u32 [#allocation5], 4
      %s35 = int_to_ptr.vmem [resolvable:$true] %s34
      %40 = dma.hbm_to_vmem [thread:$0]  %s1, 2048, %s35, [#allocation6], 128, 128, 8
    $region9: #{tpu_custom_call.1} parent=1 // pred_fallthru
      _
    // Predicated region
    $region10: #{tpu_custom_call.1} parent=1 // pred_check
      _
    $region11: #{tpu_custom_call.1} parent=1 // pred_check_branch
      %42 = sbr.rel (0) target = $region13
    $region12: #{tpu_custom_call.1} parent=1 // pred_region
      _
    $region13: #{tpu_custom_call.1} parent=1 // pred_fallthru
      _
    // Predicated region
    $region14: #{tpu_custom_call.1} parent=1 // pred_check
      _
    $region15: #{tpu_custom_call.1} parent=1 // pred_check_branch
      %44 = sbr.rel (0) target = $region17
    $region16: #{tpu_custom_call.1} parent=1 // pred_region
      _
    $region17: #{tpu_custom_call.1} parent=1 // pred_fallthru
      _
    // Predicated region
    $region18: #{tpu_custom_call.1} parent=1 // pred_check
      _
    $region19: #{tpu_custom_call.1} parent=1 // pred_check_branch
      %46 = sbr.rel (0) target = $region21
    $region20: #{tpu_custom_call.1} parent=1 // pred_region
      _
    $region21: #{tpu_custom_call.1} parent=1 // pred_fallthru
      _
    // Predicated region
    $region22: #{tpu_custom_call.1} parent=1 // pred_check
      _
    $region23: #{tpu_custom_call.1} parent=1 // pred_check_branch
      %48 = sbr.rel (0) target = $region25
    $region24: #{tpu_custom_call.1} parent=1 // pred_region
      %s50 = ssub.s32 2048, 2048
      %51 = vsyncadd [#allocation6], %s50
      %s52 = sshll.u32 [#allocation7], 4
      %s53 = int_to_ptr.vmem [resolvable:$true] %s52
      %58 = dma.hbm_to_vmem [thread:$0]  %s5, 2048, %s53, [#allocation6], 128, 128, 8
    $region25: #{tpu_custom_call.1} parent=1 // pred_fallthru
      _
    // Predicated region
    $region26: #{tpu_custom_call.1} parent=1 // pred_check
      _
    $region27: #{tpu_custom_call.1} parent=1 // pred_check_branch
      %60 = sbr.rel (0) target = $region29
    $region28: #{tpu_custom_call.1} parent=1 // pred_region
      _
    $region29: #{tpu_custom_call.1} parent=1 // pred_fallthru
      _
    // Predicated region
    $region30: #{tpu_custom_call.1} parent=1 // pred_check
      _
    $region31: #{tpu_custom_call.1} parent=1 // pred_check_branch
      %62 = sbr.rel (0) target = $region33
    $region32: #{tpu_custom_call.1} parent=1 // pred_region
      _
    $region33: #{tpu_custom_call.1} parent=1 // pred_fallthru
      _
    // Predicated region
    $region34: #{tpu_custom_call.1} parent=1 // pred_check
      _
    $region35: #{tpu_custom_call.1} parent=1 // pred_check_branch
      %64 = sbr.rel (0) target = $region37
    $region36: #{tpu_custom_call.1} parent=1 // pred_region
      _
    $region37: #{tpu_custom_call.1} parent=1 // pred_fallthru
      _
    // Predicated region
    $region38: #{tpu_custom_call.1} parent=1 // pred_check
      _
    $region39: #{tpu_custom_call.1} parent=1 // pred_check_branch
      %66 = sbr.rel (0) target = $region41
    $region40: #{tpu_custom_call.1} parent=1 // pred_region
      %67 = dma.done [#allocation3], 256
    $region41: #{tpu_custom_call.1} parent=1 // pred_fallthru
      _
    // Predicated region
    $region42: #{tpu_custom_call.1} parent=1 // pred_check
      _
    $region43: #{tpu_custom_call.1} parent=1 // pred_check_branch
      %69 = sbr.rel (0) target = $region45
    $region44: #{tpu_custom_call.1} parent=1 // pred_region
      %70 = dma.done [#allocation6], 2048
    $region45: #{tpu_custom_call.1} parent=1 // pred_fallthru
      _
    // Predicated region
    $region46: #{tpu_custom_call.1} parent=1 // pred_check
      _
    $region47: #{tpu_custom_call.1} parent=1 // pred_check_branch
      %72 = sbr.rel (0) target = $region49
    $region48: #{tpu_custom_call.1} parent=1 // pred_region
      %73 = dma.done [#allocation6], 2048
    $region49: #{tpu_custom_call.1} parent=1 // pred_fallthru
      _
    %v74 = vlaneseq
    %v75 = vand.u32 %v74, 127
    %vm76 = vcmp.lt.s32.totalorder %v75, 32
    %v77 = vld [vmem:[#allocation2] sm:$0xff]
    %v78 = vld [vmem:[#allocation2 + $0x8] sm:$0xff]
    %v79 = vld [vmem:[#allocation5] sm:$0xff]
    %v80 = vld [vmem:[#allocation5 + $0x8] sm:$0xff]
    %v81 = vld [vmem:[#allocation5 + $0x10] sm:$0xff]
    %v82 = vld [vmem:[#allocation5 + $0x18] sm:$0xff]
    %v83 = vld [vmem:[#allocation5 + $0x20] sm:$0xff]
    %v84 = vld [vmem:[#allocation5 + $0x28] sm:$0xff]
    %v85 = vld [vmem:[#allocation5 + $0x30] sm:$0xff]
    %v86 = vld [vmem:[#allocation5 + $0x38] sm:$0xff]
    %v87 = vld [vmem:[#allocation5 + $0x40] sm:$0xff]
    %v88 = vld [vmem:[#allocation5 + $0x48] sm:$0xff]
    %v89 = vld [vmem:[#allocation5 + $0x50] sm:$0xff]
    %v90 = vld [vmem:[#allocation5 + $0x58] sm:$0xff]
    %v91 = vld [vmem:[#allocation5 + $0x60] sm:$0xff]
    %v92 = vld [vmem:[#allocation5 + $0x68] sm:$0xff]
    %v93 = vld [vmem:[#allocation5 + $0x70] sm:$0xff]
    %v94 = vld [vmem:[#allocation5 + $0x78] sm:$0xff]
    %v95 = vld [vmem:[%s2] sm:$0x1]
    %v97 = vlaneseq
    %v98 = vshrl.u32 %v97, 7
    %v99 = vsub.s32 0, %v98
    %v100 = vrot.slane %v95, %v99
    %102 = vmatprep.subr.mxu0 0.0
    %103 = vmatpush1.msra.mxu0 %v94
    %104 = vmatprep.subr.mxu0 0.0
    %105 = vmatpush1.msra.mxu0 %v93
    %106 = vmatprep.subr.mxu0 0.0
    %107 = vmatpush1.msra.mxu0 %v92
    %108 = vmatprep.subr.mxu0 0.0
    %109 = vmatpush1.msra.mxu0 %v91
    %110 = vmatprep.subr.mxu0 0.0
    %111 = vmatpush1.msra.mxu0 %v90
    %112 = vmatprep.subr.mxu0 0.0
    %113 = vmatpush1.msra.mxu0 %v89
    %114 = vmatprep.subr.mxu0 0.0
    %115 = vmatpush1.msra.mxu0 %v88
    %116 = vmatprep.subr.mxu0 0.0
    %117 = vmatpush1.msra.mxu0 %v87
    %118 = vmatprep.subr.mxu0 0.0
    %119 = vmatpush1.msra.mxu0 %v86
    %120 = vmatprep.subr.mxu0 0.0
    %121 = vmatpush1.msra.mxu0 %v85
    %122 = vmatprep.subr.mxu0 0.0
    %123 = vmatpush1.msra.mxu0 %v84
    %124 = vmatprep.subr.mxu0 0.0
    %125 = vmatpush1.msra.mxu0 %v83
    %126 = vmatprep.subr.mxu0 0.0
    %127 = vmatpush1.msra.mxu0 %v82
    %128 = vmatprep.subr.mxu0 0.0
    %129 = vmatpush1.msra.mxu0 %v81
    %130 = vmatprep.subr.mxu0 0.0
    %131 = vmatpush1.msra.mxu0 %v80
    %132 = vmatprep.subr.mxu0 0.0
    %133 = vmatpush1.msra.mxu0 %v79
    %134 = vmatprep.subr.mxu0 0.0
    %135 = vmatpush2.msra.mxu0 0.0
    %136 = vmatprep.subr.mxu0 0.0
    %137 = vmatpush2.msra.mxu0 0.0
    %138 = vmatprep.subr.mxu0 0.0
    %139 = vmatpush2.msra.mxu0 0.0
    %140 = vmatprep.subr.mxu0 0.0
    %141 = vmatpush2.msra.mxu0 0.0
    %142 = vmatprep.subr.mxu0 0.0
    %143 = vmatpush2.msra.mxu0 0.0
    %144 = vmatprep.subr.mxu0 0.0
    %145 = vmatpush2.msra.mxu0 0.0
    %146 = vmatprep.subr.mxu0 0.0
    %147 = vmatpush2.msra.mxu0 0.0
    %148 = vmatprep.subr.mxu0 0.0
    %149 = vmatpush2.msra.mxu0 0.0
    %150 = vmatprep.subr.mxu0 0.0
    %151 = vmatpush2.msra.mxu0 0.0
    %152 = vmatprep.subr.mxu0 0.0
    %153 = vmatpush2.msra.mxu0 0.0
    %154 = vmatprep.subr.mxu0 0.0
    %155 = vmatpush2.msra.mxu0 0.0
    %156 = vmatprep.subr.mxu0 0.0
    %157 = vmatpush2.msra.mxu0 0.0
    %158 = vmatprep.subr.mxu0 0.0
    %159 = vmatpush2.msra.mxu0 0.0
    %160 = vmatprep.subr.mxu0 0.0
    %161 = vmatpush2.msra.mxu0 0.0
    %162 = vmatprep.subr.mxu0 0.0
    %163 = vmatpush2.msra.mxu0 0.0
    %164 = vmatprep.subr.mxu0 0.0
    %165 = vmatpush2.msra.mxu0 0.0
    %166 = vmatprep.mubr.f32.mxu0 0.0
    %167 = vmatmul.mubr.f32.gmra.mxu0 %v77
    %v168 = vpop.f32.mrf.mxu0
    %v169 = vadd.f32 %v100, %v168
    %v170 = vpop.f32.mrf.mxu0
    %171 = vmatprep.mubr.f32.mxu0 0.0
    %172 = vmatmul.mubr.f32.gmra.mxu0 %v78
    %v173 = vpop.f32.mrf.mxu0
    %v174 = vadd.f32 %v100, %v173
    %v175 = vpop.f32.mrf.mxu0
    %176 = vdwg.mxu0
    %v177 = vld [vmem:[%s3] sm:$0x1]
    %v178 = vld [vmem:[%s4] sm:$0x1]
    %179 = vadd.xlane.f32.xlu0 %v169
    %v180 = vpop.xlane.xlu0 %179
    %181 = vadd.xlane.f32.xlu0 %v174
    %v182 = vpop.xlane.xlu0 %181
    %v183 = vmul.f32 %v180, 0.03125
    %v184 = vmul.f32 %v182, 0.03125
    %v185 = vsub.f32 %v169, %v183
    %v186 = vsub.f32 %v174, %v184
    %v187 = vsel %vm76, 1, 0
    %vm188 = vcmp.eq.s32.totalorder %v187, 1
    %v189 = vsel %vm188, %v185, 0.0
    %v190 = vsel %vm188, %v186, 0.0
    %v191 = vmul.f32 %v189, %v189
    %v192 = vmul.f32 %v190, %v190
    %193 = vadd.xlane.f32.xlu0 %v191
    %v194 = vpop.xlane.xlu0 %193
    %195 = vadd.xlane.f32.xlu0 %v192
    %v196 = vpop.xlane.xlu0 %195
    %v197 = vmul.f32 %v194, 0.03125
    %v198 = vmul.f32 %v196, 0.03125
    %v199 = vadd.f32 %v197, 1e-05
    %v200 = vadd.f32 %v198, 1e-05
    %v201 = vrsqrt.pop %v199
    %v202 = vrsqrt.pop %v200
    %v203 = vmul.f32 %v189, %v201
    %v204 = vmul.f32 %v190, %v202
    %v206 = vlaneseq
    %v207 = vshrl.u32 %v206, 7
    %v208 = vsub.s32 0, %v207
    %v209 = vrot.slane %v177, %v208
    %v211 = vmul.f32 %v203, %v209
    %v212 = vmul.f32 %v204, %v209
    %v214 = vlaneseq
    %v215 = vshrl.u32 %v214, 7
    %v216 = vsub.s32 0, %v215
    %v217 = vrot.slane %v178, %v216
    %v219 = vadd.f32 %v211, %v217
    %v220 = vadd.f32 %v212, %v217
    %v221 = vmax.f32 %v219, 0.0
    %v222 = vmax.f32 %v220, 0.0
    %v223 = vld [vmem:[#allocation7] sm:$0xff]
    %v224 = vld [vmem:[#allocation7 + $0x8] sm:$0xff]
    %v225 = vld [vmem:[#allocation7 + $0x10] sm:$0xff]
    %v226 = vld [vmem:[#allocation7 + $0x18] sm:$0xff]
    %v227 = vld [vmem:[#allocation7 + $0x20] sm:$0xff]
    %v228 = vld [vmem:[#allocation7 + $0x28] sm:$0xff]
    %v229 = vld [vmem:[#allocation7 + $0x30] sm:$0xff]
    %v230 = vld [vmem:[#allocation7 + $0x38] sm:$0xff]
    %v231 = vld [vmem:[#allocation7 + $0x40] sm:$0xff]
    %v232 = vld [vmem:[#allocation7 + $0x48] sm:$0xff]
    %v233 = vld [vmem:[#allocation7 + $0x50] sm:$0xff]
    %v234 = vld [vmem:[#allocation7 + $0x58] sm:$0xff]
    %v235 = vld [vmem:[#allocation7 + $0x60] sm:$0xff]
    %v236 = vld [vmem:[#allocation7 + $0x68] sm:$0xff]
    %v237 = vld [vmem:[#allocation7 + $0x70] sm:$0xff]
    %v238 = vld [vmem:[#allocation7 + $0x78] sm:$0xff]
    %v239 = vld [vmem:[%s6] sm:$0x1]
    %v241 = vlaneseq
    %v242 = vshrl.u32 %v241, 7
    %v243 = vsub.s32 0, %v242
    %v244 = vrot.slane %v239, %v243
    %246 = vmatprep.subr.mxu0 0.0
    %247 = vmatpush1.msra.mxu0 %v238
    %248 = vmatprep.subr.mxu0 0.0
    %249 = vmatpush1.msra.mxu0 %v237
    %250 = vmatprep.subr.mxu0 0.0
    %251 = vmatpush1.msra.mxu0 %v236
    %252 = vmatprep.subr.mxu0 0.0
    %253 = vmatpush1.msra.mxu0 %v235
    %254 = vmatprep.subr.mxu0 0.0
    %255 = vmatpush1.msra.mxu0 %v234
    %256 = vmatprep.subr.mxu0 0.0
    %257 = vmatpush1.msra.mxu0 %v233
    %258 = vmatprep.subr.mxu0 0.0
    %259 = vmatpush1.msra.mxu0 %v232
    %260 = vmatprep.subr.mxu0 0.0
    %261 = vmatpush1.msra.mxu0 %v231
    %262 = vmatprep.subr.mxu0 0.0
    %263 = vmatpush1.msra.mxu0 %v230
    %264 = vmatprep.subr.mxu0 0.0
    %265 = vmatpush1.msra.mxu0 %v229
    %266 = vmatprep.subr.mxu0 0.0
    %267 = vmatpush1.msra.mxu0 %v228
    %268 = vmatprep.subr.mxu0 0.0
    %269 = vmatpush1.msra.mxu0 %v227
    %270 = vmatprep.subr.mxu0 0.0
    %271 = vmatpush1.msra.mxu0 %v226
    %272 = vmatprep.subr.mxu0 0.0
    %273 = vmatpush1.msra.mxu0 %v225
    %274 = vmatprep.subr.mxu0 0.0
    %275 = vmatpush1.msra.mxu0 %v224
    %276 = vmatprep.subr.mxu0 0.0
    %277 = vmatpush1.msra.mxu0 %v223
    %278 = vmatprep.subr.mxu0 0.0
    %279 = vmatpush2.msra.mxu0 0.0
    %280 = vmatprep.subr.mxu0 0.0
    %281 = vmatpush2.msra.mxu0 0.0
    %282 = vmatprep.subr.mxu0 0.0
    %283 = vmatpush2.msra.mxu0 0.0
    %284 = vmatprep.subr.mxu0 0.0
    %285 = vmatpush2.msra.mxu0 0.0
    %286 = vmatprep.subr.mxu0 0.0
    %287 = vmatpush2.msra.mxu0 0.0
    %288 = vmatprep.subr.mxu0 0.0
    %289 = vmatpush2.msra.mxu0 0.0
    %290 = vmatprep.subr.mxu0 0.0
    %291 = vmatpush2.msra.mxu0 0.0
    %292 = vmatprep.subr.mxu0 0.0
    %293 = vmatpush2.msra.mxu0 0.0
    %294 = vmatprep.subr.mxu0 0.0
    %295 = vmatpush2.msra.mxu0 0.0
    %296 = vmatprep.subr.mxu0 0.0
    %297 = vmatpush2.msra.mxu0 0.0
    %298 = vmatprep.subr.mxu0 0.0
    %299 = vmatpush2.msra.mxu0 0.0
    %300 = vmatprep.subr.mxu0 0.0
    %301 = vmatpush2.msra.mxu0 0.0
    %302 = vmatprep.subr.mxu0 0.0
    %303 = vmatpush2.msra.mxu0 0.0
    %304 = vmatprep.subr.mxu0 0.0
    %305 = vmatpush2.msra.mxu0 0.0
    %306 = vmatprep.subr.mxu0 0.0
    %307 = vmatpush2.msra.mxu0 0.0
    %308 = vmatprep.subr.mxu0 0.0
    %309 = vmatpush2.msra.mxu0 0.0
    %310 = vmatprep.mubr.f32.mxu0 0.0
    %311 = vmatmul.mubr.f32.gmra.mxu0 %v221
    %v312 = vpop.f32.mrf.mxu0
    %v313 = vadd.f32 %v244, %v312
    %v314 = vpop.f32.mrf.mxu0
    %315 = vmatprep.mubr.f32.mxu0 0.0
    %316 = vmatmul.mubr.f32.gmra.mxu0 %v222
    %v317 = vpop.f32.mrf.mxu0
    %v318 = vadd.f32 %v244, %v317
    %v319 = vpop.f32.mrf.mxu0
    %320 = vdwg.mxu0
    %v321 = vld [vmem:[%s7] sm:$0x1]
    %v322 = vld [vmem:[%s8] sm:$0x1]
    %323 = vadd.xlane.f32.xlu0 %v313
    %v324 = vpop.xlane.xlu0 %323
    %325 = vadd.xlane.f32.xlu0 %v318
    %v326 = vpop.xlane.xlu0 %325
    %v327 = vmul.f32 %v324, 0.03125
    %v328 = vmul.f32 %v326, 0.03125
    %v329 = vsub.f32 %v313, %v327
    %v330 = vsub.f32 %v318, %v328
    %v331 = vsel %vm188, %v329, 0.0
    %v332 = vsel %vm188, %v330, 0.0
    %v333 = vmul.f32 %v331, %v331
    %v334 = vmul.f32 %v332, %v332
    %335 = vadd.xlane.f32.xlu0 %v333
    %v336 = vpop.xlane.xlu0 %335
    %337 = vadd.xlane.f32.xlu0 %v334
    %v338 = vpop.xlane.xlu0 %337
    %v339 = vmul.f32 %v336, 0.03125
    %v340 = vmul.f32 %v338, 0.03125
    %v341 = vadd.f32 %v339, 1e-05
    %v342 = vadd.f32 %v340, 1e-05
    %v343 = vrsqrt.pop %v341
    %v344 = vrsqrt.pop %v342
    %v345 = vmul.f32 %v331, %v343
    %v346 = vmul.f32 %v332, %v344
    %v348 = vlaneseq
    %v349 = vshrl.u32 %v348, 7
    %v350 = vsub.s32 0, %v349
    %v351 = vrot.slane %v321, %v350
    %v353 = vmul.f32 %v345, %v351
    %v354 = vmul.f32 %v346, %v351
    %v356 = vlaneseq
    %v357 = vshrl.u32 %v356, 7
    %v358 = vsub.s32 0, %v357
    %v359 = vrot.slane %v322, %v358
    %v361 = vadd.f32 %v353, %v359
    %v362 = vadd.f32 %v354, %v359
    %v363 = vmax.f32 %v361, 0.0
    %v364 = vmax.f32 %v362, 0.0
    %365 = vst [vmem:[#allocation8] sm:$0xff] %v363
    %366 = vst [vmem:[#allocation8 + $0x8] sm:$0xff] %v364
    // Predicated region
    $region50: #{tpu_custom_call.1} parent=1 // pred_check
      _
    $region51: #{tpu_custom_call.1} parent=1 // pred_check_branch
      %368 = sbr.rel (0) target = $region53
    $region52: #{tpu_custom_call.1} parent=1 // pred_region
      %s370 = ssub.s32 256, 256
      %371 = vsyncadd [#allocation4], %s370
      %s372 = sshll.u32 [#allocation8], 4
      %s373 = int_to_ptr.vmem [resolvable:$true] %s372
      %378 = dma.vmem_to_hbm [thread:$0]  %s373, 256, %s9, [#allocation4], 128, 128, 8
    $region53: #{tpu_custom_call.1} parent=1 // pred_fallthru
      _
    // Predicated region
    $region54: #{tpu_custom_call.1} parent=1 // pred_check
      _
    $region55: #{tpu_custom_call.1} parent=1 // pred_check_branch
      %380 = sbr.rel (0) target = $region57
    $region56: #{tpu_custom_call.1} parent=1 // pred_region
      %381 = dma.done [#allocation4], 256
    $region57: #{tpu_custom_call.1} parent=1 // pred_fallthru
      _
    %382 = vsyncpa [#allocation3], 1
    %383 = vsyncpa [#allocation6], 1
    %384 = vsyncpa [#allocation4], 1

</llo_original>
